<compile_context>
chip_gen: v5e
topology: v5e:2x2
jax: 0.10.0
libtpu: 0.0.40
codegen_flags: <defaults>
</compile_context>

<pallas_src>
import jax
import jax.numpy as jnp
from jax import lax
from jax.experimental import pallas as pl
from jax.experimental.pallas import tpu as pltpu


def _round_up(x, m):
    return ((x + m - 1) // m) * m


def _sublane_multiple(dtype):
    # dtype-aware min sublane tile: f32 -> 8, bf16/f16 -> 16, int8/fp8 -> 32.
    return {4: 8, 2: 16, 1: 32}.get(jnp.dtype(dtype).itemsize, 8)


def _pick_tile(dim, cap, align):
    """Pick a tile size for `dim`.

    Preference order:
      1. the full dim if it fits under `cap` (block == full array dim, no pad)
      2. the largest multiple of `align` <= cap that divides dim (no pad)
      3. cap (caller zero-pads `dim` up to a multiple of it)
    """
    if dim <= cap:
        return dim
    t = (cap // align) * align
    while t >= align:
        if dim % t == 0:
            return t
        t -= align
    return (cap // align) * align


def _device_caps():
    try:
        kind = jax.devices()[0].device_kind.lower()
    except Exception:  # pragma: no cover - defensive; fall back to safe defaults
        kind = ""
    if "v6" in kind:
        # v6e: 128 MiB VMEM, 2x256 MXU -> push K/N tiles, generous scoped limit.
        return dict(tm_cap=256, tn_cap=1024, tk_cap=4096, vmem_limit=96 * 1024 * 1024)
    if "v5 lite" in kind or "v5e" in kind or "v5litepod" in kind:
        # v5e: 128 MiB physical, 16 MiB scoped default -> raise limit, medium tiles.
        return dict(tm_cap=256, tn_cap=512, tk_cap=2048, vmem_limit=64 * 1024 * 1024)
    # Default also covers v7x (64 MiB physical VMEM): ~14 MiB double-buffered
    # footprint at f32, well under a 48 MiB limit.
    return dict(tm_cap=256, tn_cap=512, tk_cap=2048, vmem_limit=48 * 1024 * 1024)


def _linear_kernel_single_k(x_ref, w_ref, b_ref, o_ref):
    # Whole K reduction in one tile: no accumulator scratch needed.
    acc = lax.dot_general(
        x_ref[...], w_ref[...],
        dimension_numbers=(((1,), (1,)), ((), ())),
        preferred_element_type=jnp.float32,
    )
    o_ref[...] = (acc + b_ref[...].astype(jnp.float32)).astype(o_ref.dtype)


def _linear_kernel_multi_k(x_ref, w_ref, b_ref, o_ref, acc_ref):
    # x_ref : [tm, tk]   (embedding tile, lane = D)
    # w_ref : [tn, tk]   (weight tile in PyTorch [C, D] layout, lane = D)
    # b_ref : [1,  tn]
    # o_ref : [tm, tn]
    # acc_ref: [tm, tn]  f32 accumulator, persists across the k grid axis.
    k = pl.program_id(2)

    @pl.when(k == 0)
    def _():
        acc_ref[...] = jnp.zeros_like(acc_ref)

    acc_ref[...] += lax.dot_general(
        x_ref[...], w_ref[...],
        dimension_numbers=(((1,), (1,)), ((), ())),
        preferred_element_type=jnp.float32,
    )

    @pl.when(k == pl.num_programs(2) - 1)
    def _():
        o_ref[...] = (acc_ref[...] + b_ref[...].astype(jnp.float32)).astype(o_ref.dtype)


def classifier_forward(embedding, weight, bias, *, tm=None, tn=None, tk=None):
    """embedding: [B, D], weight: [C, D] (PyTorch layout), bias: [C] -> [B, C]."""
    B, D = embedding.shape
    C, D2 = weight.shape
    assert D == D2 and bias.shape == (C,)

    caps = _device_caps()
    sub = _sublane_multiple(embedding.dtype)

    tm = tm or _pick_tile(B, caps["tm_cap"], sub)
    tn = tn or _pick_tile(C, caps["tn_cap"], 128)
    tk = tk or _pick_tile(D, caps["tk_cap"], 128)

    Bp, Cp, Dp = _round_up(B, tm), _round_up(C, tn), _round_up(D, tk)

    # Zero-pad ONLY the dims whose tile does not divide them (rare with the
    # tile picker above); padded K columns contribute 0 to the accumulation.
    x = embedding
    w = weight
    b2 = bias.reshape(1, C)
    if Bp != B or Dp != D:
        x = jnp.pad(x, ((0, Bp - B), (0, Dp - D)))
    if Cp != C or Dp != D:
        w = jnp.pad(w, ((0, Cp - C), (0, Dp - D)))
    if Cp != C:
        b2 = jnp.pad(b2, ((0, 0), (0, Cp - C)))

    gm, gn, gk = Bp // tm, Cp // tn, Dp // tk
    grid = (gm, gn, gk)

    out_dtype = embedding.dtype
    x_item = jnp.dtype(x.dtype).itemsize
    w_item = jnp.dtype(w.dtype).itemsize
    o_item = jnp.dtype(out_dtype).itemsize
    cost = pl.CostEstimate(
        flops=2 * B * D * C,
        transcendentals=0,
        # Actual tiled traffic: x re-read per C tile, weight re-read per B tile.
        bytes_accessed=(Bp * Dp * x_item * gn
                        + Cp * Dp * w_item * gm
                        + Bp * Cp * o_item
                        + Cp * jnp.dtype(bias.dtype).itemsize * gm),
    )

    if gk == 1:
        kernel = _linear_kernel_single_k
        scratch = []
    else:
        kernel = _linear_kernel_multi_k
        scratch = [pltpu.VMEM((tm, tn), jnp.float32)]

    out = pl.pallas_call(
        kernel,
        out_shape=jax.ShapeDtypeStruct((Bp, Cp), out_dtype),
        grid_spec=pltpu.PrefetchScalarGridSpec(
            num_scalar_prefetch=0,
            grid=grid,
            in_specs=[
                pl.BlockSpec((tm, tk), lambda i, j, k: (i, k)),   # x
                pl.BlockSpec((tn, tk), lambda i, j, k: (j, k)),   # weight [C, D]
                pl.BlockSpec((1, tn), lambda i, j, k: (0, j)),    # bias
            ],
            out_specs=pl.BlockSpec((tm, tn), lambda i, j, k: (i, j)),
            scratch_shapes=scratch,
        ),
        compiler_params=pltpu.CompilerParams(
            dimension_semantics=("parallel", "parallel", "arbitrary"),
            vmem_limit_bytes=caps["vmem_limit"],
        ),
        cost_estimate=cost,
    )(x, w, b2)

    if Bp != B or Cp != C:
        out = out[:B, :C]
    return out


if __name__ == "__main__":
    B, embd_dim, n_classes = 2, 32, 8

    key = jax.random.PRNGKey(0)
    k_x, k_w, k_b = jax.random.split(key, 3)

    # Deterministic parameter init (mimics nn.Linear default uniform bound).
    bound = 1.0 / (embd_dim ** 0.5)
    weight = jax.random.uniform(k_w, (n_classes, embd_dim),
                                minval=-bound, maxval=bound, dtype=jnp.float32)
    bias = jax.random.uniform(k_b, (n_classes,),
                              minval=-bound, maxval=bound, dtype=jnp.float32)
    embedding = jax.random.normal(k_x, (B, embd_dim), dtype=jnp.float32)

    out = classifier_forward(embedding, weight, bias)
    out = jax.block_until_ready(out)

    # Reference check in plain JAX (same math as torch F.linear).
    ref = embedding @ weight.T + bias
    assert out.shape == (B, n_classes)
    assert jnp.allclose(out, ref, atol=1e-5, rtol=1e-5)

    print("KERNEL_OK")
</pallas_src>

<mosaic_0001>
module attributes {stable_mosaic.version = 11 : i64} {
  func.func @_linear_kernel_single_k(%arg0: i32, %arg1: i32, %arg2: i32, %arg3: memref<2x32xf32, #tpu.memory_space<vmem>>, %arg4: memref<8x32xf32, #tpu.memory_space<vmem>>, %arg5: memref<1x8xf32, #tpu.memory_space<vmem>>, %arg6: memref<2x8xf32, #tpu.memory_space<vmem>>) attributes {dimension_semantics = [#tpu.dimension_semantics<parallel>, #tpu.dimension_semantics<parallel>, #tpu.dimension_semantics<arbitrary>], iteration_bounds = array<i64: 1, 1, 1>, scalar_prefetch = 0 : i64, scratch_operands = 0 : i64, tpu.core_type = #tpu.core_type<tc>, window_params = [{transform_indices = @transform_0, window_bounds = array<i64: 2, 32>}, {transform_indices = @transform_1, window_bounds = array<i64: 8, 32>}, {transform_indices = @transform_2, window_bounds = array<i64: 1, 8>}, {transform_indices = @transform_3, window_bounds = array<i64: 2, 8>}]} {
    %c0 = arith.constant 0 : index
    %c0_0 = arith.constant 0 : index
    %0 = vector.load %arg3[%c0, %c0_0] : memref<2x32xf32, #tpu.memory_space<vmem>>, vector<2x32xf32>
    %c0_1 = arith.constant 0 : index
    %c0_2 = arith.constant 0 : index
    %1 = vector.load %arg4[%c0_1, %c0_2] : memref<8x32xf32, #tpu.memory_space<vmem>>, vector<8x32xf32>
    %cst = arith.constant dense<0.000000e+00> : vector<2x8xf32>
    %2 = tpu.matmul %0, %1, %cst {dimension_numbers = #tpu.dot_dimension_numbers<[1], [1], [0], [0], [0, 0, 1, 0], [], []>} : vector<2x32xf32>, vector<8x32xf32>, vector<2x8xf32> -> vector<2x8xf32>
    %c0_3 = arith.constant 0 : index
    %c0_4 = arith.constant 0 : index
    %3 = vector.load %arg5[%c0_3, %c0_4] : memref<1x8xf32, #tpu.memory_space<vmem>>, vector<1x8xf32>
    %4 = vector.broadcast %3 : vector<1x8xf32> to vector<2x8xf32>
    %5 = arith.addf %2, %4 : vector<2x8xf32>
    %c0_5 = arith.constant 0 : index
    %c0_6 = arith.constant 0 : index
    %6 = vector.load %arg6[%c0_5, %c0_6] : memref<2x8xf32, #tpu.memory_space<vmem>>, vector<2x8xf32>
    tpu.vector_store %arg6[%c0_5, %c0_6], %5 {strides = array<i32>} : memref<2x8xf32, #tpu.memory_space<vmem>>, vector<2x8xf32>,
    return
  }
  func.func @transform_0(%arg0: i32, %arg1: i32, %arg2: i32) -> (i32, i32) {
    %c0_i32 = arith.constant 0 : i32
    return %arg0, %arg2 : i32, i32
  }
  func.func @transform_1(%arg0: i32, %arg1: i32, %arg2: i32) -> (i32, i32) {
    %c0_i32 = arith.constant 0 : i32
    return %arg1, %arg2 : i32, i32
  }
  func.func @transform_2(%arg0: i32, %arg1: i32, %arg2: i32) -> (i32, i32) {
    %c0_i32 = arith.constant 0 : i32
    %c0_i32_0 = arith.constant 0 : i32
    return %c0_i32, %arg1 : i32, i32
  }
  func.func @transform_3(%arg0: i32, %arg1: i32, %arg2: i32) -> (i32, i32) {
    %c0_i32 = arith.constant 0 : i32
    return %arg0, %arg1 : i32, i32
  }
}

</mosaic_0001>

<llo_original>
// kernel: tpu_custom_call.1
$region0: #{tpu_custom_call.1}
  #allocation0 [shape = 'u32[]', space=smem, size = 0x4, offset = 0x4, fixed_abs, tag = 'smem constant byte address 0x4 - core index']
  #allocation1 [shape = 'u32[72,128]{1,0:T(1,128)}', space=vmem, size = 0x9000, scoped, tag = 'internal scratch']
  %s0 = inlined_call_operand.hbm [shape: f32[2,32], index: 0, kind: input, shape index: {}]
  %s1 = inlined_call_operand.hbm [shape: f32[8,32], index: 1, kind: input, shape index: {}]
  %s2 = inlined_call_operand.vmem [shape: f32[1,8], index: 2, kind: input, shape index: {}]
  %s3 = inlined_call_operand.hbm [shape: f32[2,8], index: 3, kind: output, shape index: {}]
  %s4 = sld [smem:[#allocation0]]
  $region30: #{tpu_custom_call.1} parent=0
    _
  %s6 = ssub.s32 1, %s4
  %s7 = scalar_select 0, %s6, %s4
  $region1: #{tpu_custom_call.1} parent=0
    #allocation2 [shape = 'u8[1024]{0}', space=vmem, size = 0x400, scoped, tag = 'input window, operand 0, single buffered']
    #allocation3 [shape = 's32[1]{0}', space=sflag, size = 0x4, scoped, tag = 'scoped memory for tpu_custom_call.1']
    #allocation4 [shape = 's32[1]{0}', space=sflag, size = 0x4, scoped, tag = 'scoped memory for tpu_custom_call.1']
    #allocation5 [shape = 'u8[4096]{0}', space=vmem, size = 0x1000, scoped, tag = 'input window, operand 1, single buffered']
    #allocation6 [shape = 's32[1]{0}', space=sflag, size = 0x4, scoped, tag = 'scoped memory for tpu_custom_call.1']
    #allocation7 [shape = 'u8[1024]{0}', space=vmem, size = 0x400, scoped, tag = 'output window, operand 0, single buffered']
    %8 = vsyncpa [#allocation3], 0
    %9 = vsyncpa [#allocation6], 0
    %10 = vsyncpa [#allocation4], 0
    // Predicated region
    $region2: #{tpu_custom_call.1} parent=1 // pred_check
      _
    $region3: #{tpu_custom_call.1} parent=1 // pred_check_branch
      %12 = sbr.rel (0) target = $region5
    $region4: #{tpu_custom_call.1} parent=1 // pred_region
      %14 = vsyncadd [#allocation3], 0
      %s16 = sshll.u32 %s0, 4
      %s17 = int_to_ptr.hbm [resolvable:$true] %s16
      %s18 = sshll.u32 [#allocation2], 4
      %s19 = int_to_ptr.vmem [resolvable:$true] %s18
      %21 = dma.hbm_to_vmem [thread:$0]  %s17, 32, %s19, [#allocation3]
    $region5: #{tpu_custom_call.1} parent=1 // pred_fallthru
      _
    // Predicated region
    $region6: #{tpu_custom_call.1} parent=1 // pred_check
      _
    $region7: #{tpu_custom_call.1} parent=1 // pred_check_branch
      %23 = sbr.rel (0) target = $region9
    $region8: #{tpu_custom_call.1} parent=1 // pred_region
      %25 = vsyncadd [#allocation6], 0
      %s27 = sshll.u32 %s1, 4
      %s28 = int_to_ptr.hbm [resolvable:$true] %s27
      %s29 = sshll.u32 [#allocation5], 4
      %s30 = int_to_ptr.vmem [resolvable:$true] %s29
      %32 = dma.hbm_to_vmem [thread:$0]  %s28, 128, %s30, [#allocation6]
    $region9: #{tpu_custom_call.1} parent=1 // pred_fallthru
      _
    // Predicated region
    $region10: #{tpu_custom_call.1} parent=1 // pred_check
      _
    $region11: #{tpu_custom_call.1} parent=1 // pred_check_branch
      %34 = sbr.rel (0) target = $region13
    $region12: #{tpu_custom_call.1} parent=1 // pred_region
      _
    $region13: #{tpu_custom_call.1} parent=1 // pred_fallthru
      _
    // Predicated region
    $region14: #{tpu_custom_call.1} parent=1 // pred_check
      _
    $region15: #{tpu_custom_call.1} parent=1 // pred_check_branch
      %36 = sbr.rel (0) target = $region17
    $region16: #{tpu_custom_call.1} parent=1 // pred_region
      %38 = dma.done [#allocation3], 32
    $region17: #{tpu_custom_call.1} parent=1 // pred_fallthru
      _
    // Predicated region
    $region18: #{tpu_custom_call.1} parent=1 // pred_check
      _
    $region19: #{tpu_custom_call.1} parent=1 // pred_check_branch
      %40 = sbr.rel (0) target = $region21
    $region20: #{tpu_custom_call.1} parent=1 // pred_region
      %42 = dma.done [#allocation6], 128
    $region21: #{tpu_custom_call.1} parent=1 // pred_fallthru
      _
    %v43 = vld [vmem:[#allocation2] sm:$0x3]
    %v44 = vld [vmem:[#allocation5] sm:$0xff]
    %v45 = vld [vmem:[%s2] sm:$0x1]
    %v47 = vperm.slane %v45, 0
    %vm49 = vcmask 261120
    %v51 = vsel %vm49, %v43, 0
    %v54 = vsel %vm49, %v44, 0
    %56 = vmatpush.xpose.msra.mxu0 0.0
    %57 = vmatpush.xpose.msra.mxu0 0.0
    %58 = vmatpush.xpose.msra.mxu0 0.0
    %59 = vmatpush.xpose.msra.mxu0 0.0
    %60 = vmatpush.xpose.msra.mxu0 0.0
    %61 = vmatpush.xpose.msra.mxu0 0.0
    %62 = vmatpush.xpose.msra.mxu0 0.0
    %63 = vmatpush.xpose.msra.mxu0 0.0
    %64 = vmatpush.xpose.msra.mxu0 0.0
    %65 = vmatpush.xpose.msra.mxu0 0.0
    %66 = vmatpush.xpose.msra.mxu0 0.0
    %67 = vmatpush.xpose.msra.mxu0 0.0
    %68 = vmatpush.xpose.msra.mxu0 0.0
    %69 = vmatpush.xpose.msra.mxu0 0.0
    %70 = vmatpush.xpose.msra.mxu0 0.0
    %71 = vmatpush.xpose.msra.mxu0 %v54
    %72 = vmatmul.f32.gmra.mxu0 %v51
    %v73 = vpop.f32.mrf.mxu0
    %v74 = vadd.f32 %v47, %v73
    %75 = vdwg.mxu0
    %vm76 = vcmask 58368
    %77 = vst.msk [vmem:[#allocation7] sm:$0x3] %vm76, %v74
    // Predicated region
    $region22: #{tpu_custom_call.1} parent=1 // pred_check
      _
    $region23: #{tpu_custom_call.1} parent=1 // pred_check_branch
      %79 = sbr.rel (0) target = $region25
    $region24: #{tpu_custom_call.1} parent=1 // pred_region
      %81 = vsyncadd [#allocation4], 0
      %s83 = sshll.u32 [#allocation7], 4
      %s84 = int_to_ptr.vmem [resolvable:$true] %s83
      %s85 = sshll.u32 %s3, 4
      %s86 = int_to_ptr.hbm [resolvable:$true] %s85
      %88 = dma.vmem_to_hbm [thread:$0]  %s84, 32, %s86, [#allocation4]
    $region25: #{tpu_custom_call.1} parent=1 // pred_fallthru
      _
    // Predicated region
    $region26: #{tpu_custom_call.1} parent=1 // pred_check
      _
    $region27: #{tpu_custom_call.1} parent=1 // pred_check_branch
      %90 = sbr.rel (0) target = $region29
    $region28: #{tpu_custom_call.1} parent=1 // pred_region
      %92 = dma.done [#allocation4], 32
    $region29: #{tpu_custom_call.1} parent=1 // pred_fallthru
      _
    %93 = vsyncpa [#allocation3], 1
    %94 = vsyncpa [#allocation6], 1
    %95 = vsyncpa [#allocation4], 1

</llo_original>
